<compile_context>
chip_gen: v7x
topology: tpu7x:2x2x1
jax: 0.10.0
libtpu: 0.0.40
codegen_flags: <defaults>
</compile_context>

<pallas_src>
import functools

import jax
import jax.numpy as jnp
from jax.experimental import pallas as pl
from jax.experimental.pallas import tpu as pltpu


def _round_up(v, m):
    return ((v + m - 1) // m) * m


def _device_kind():
    try:
        return jax.devices()[0].device_kind.lower()
    except Exception:
        return ""


def _default_elementwise_dtype():
    kind = _device_kind()
    if ("v6" in kind) or ("v7" in kind):
        return jnp.bfloat16        # bf16 VPU / EUP available
    return jnp.float32             # v5e and older: f32 elementwise path


def _default_vmem_limit_bytes():
    kind = _device_kind()
    if "v7" in kind:
        return 48 * 1024 * 1024    # 64 MiB physical VMEM -> leave headroom
    if ("v6" in kind) or ("v5" in kind) or ("v4" in kind):
        return 64 * 1024 * 1024    # 128 MiB physical VMEM
    return None                    # unknown chip: keep compiler default


def _pick_batch_tile(batch, batch_tile, *, mult=8, min_programs=1):
    """Batch tile (multiple of `mult`) that limits last-tile padding waste."""
    b_r = _round_up(max(int(batch), 1), mult)
    bt_max = min(_round_up(int(batch_tile), mult), b_r)
    if min_programs > 1:
        per_prog = _round_up(-(-b_r // min_programs), mult)
        bt_max = max(mult, min(bt_max, per_prog))
    best_bt = bt_max
    best_waste = _round_up(b_r, bt_max) - batch
    bt = bt_max - mult
    lo = max(mult, bt_max // 2)
    while bt >= lo:
        waste = _round_up(b_r, bt) - batch
        if waste < best_waste:
            best_bt, best_waste = bt, waste
        bt -= mult
    return best_bt


def _pick_k_tile(k_pad, k_tile):
    """Largest multiple of 128 <= k_tile that divides k_pad."""
    kt = min(k_pad, max(128, _round_up(int(k_tile), 128)))
    while k_pad % kt != 0:
        kt -= 128
    return kt


def _rbf_kan_kernel(x_ref, centers_ref, e_ref, sw_ref, bw_ref, bb_ref,
                    o_ref, acc_ref, *, inv_alpha, ew_dtype):
    """One (batch tile, K tile) step of the RBFKANLayer forward.

    x_ref       : VMEM (Bt, D_pad)         input activations (zero padded)
    centers_ref : VMEM (1, Kt)        f32  RBF center per fused column
    e_ref       : VMEM (D_pad, Kt)         0/1 expansion matrix (x @ E replicates x)
    sw_ref      : VMEM (Kt, Dout_pad)      fused spline weight tile (row = d*G+g)
    bw_ref      : VMEM (D_pad, Dout_pad)   base linear weight (transposed)
    bb_ref      : VMEM (1, Dout_pad)  f32  base linear bias
    o_ref       : VMEM (Bt, Dout_pad)      output (written at last K tile)
    acc_ref     : VMEM (Bt, Dout_pad) f32  accumulator scratch
    """
    k = pl.program_id(1)
    mm_dtype = sw_ref.dtype

    # ---- base update (SiLU(x) @ W_base + b), folded into the k == 0 step ----
    @pl.when(k == 0)
    def _():
        xe = x_ref[...].astype(ew_dtype)
        silu = xe * jax.nn.sigmoid(xe)
        acc_ref[...] = (
            jnp.dot(silu.astype(mm_dtype), bw_ref[...],
                    preferred_element_type=jnp.float32)
            + bb_ref[...])

    # ---- RBF spline contribution of this K tile -----------------------------
    # Dense packing c = d*G + g: xb[b, c] = x[b, c // G], built on the MXU via
    # the 0/1 expansion matrix (no per-grid-block lane padding, no relayout).
    xb = jnp.dot(x_ref[...].astype(mm_dtype), e_ref[...],
                 preferred_element_type=jnp.float32).astype(ew_dtype)
    dist = (xb - centers_ref[...].astype(ew_dtype)) * inv_alpha
    basis = jnp.exp(-(dist * dist))                     # gaussian RBF
    # TODO(synk): only rbf_mode='gaussian_rbf' (the module default) is
    # implemented; the multiquadratic / thin-plate / inverse-quadric variants
    # would only replace the `basis = ...` line above.
    acc_ref[...] += jnp.dot(basis.astype(mm_dtype), sw_ref[...],
                            preferred_element_type=jnp.float32)

    @pl.when(k == pl.num_programs(1) - 1)
    def _():
        o_ref[...] = acc_ref[...].astype(o_ref.dtype)


def pack_rbf_kan_params(grid, spline_weight, base_weight, base_bias, *,
                        compute_dtype=jnp.bfloat16, elementwise_dtype=None):
    """One-time (init-time) repacking of RBFKANLayer parameters.

    Hoisted out of the forward path so each forward call pays no reshape /
    transpose / pad HBM traffic over the weights.
    """
    if elementwise_dtype is None:
        if jnp.dtype(compute_dtype) == jnp.float32:
            elementwise_dtype = jnp.float32
        else:
            elementwise_dtype = _default_elementwise_dtype()

    Dout, D = base_weight.shape
    G = int(grid.shape[0])
    assert spline_weight.shape == (D * G, Dout)

    D_pad = _round_up(D, 128)
    K = D * G
    K_pad = _round_up(K, 128)          # dense: only the TOTAL K is padded
    Dout_pad = _round_up(Dout, 128)

    # Fused spline weight: native PyTorch row order (row = d*G + g) -> no
    # transpose needed; pad rows to K_pad and columns to Dout_pad with zeros.
    sw = jnp.pad(spline_weight.astype(jnp.float32),
                 ((0, K_pad - K), (0, Dout_pad - Dout))).astype(compute_dtype)

    # 0/1 expansion matrix: (x @ E)[b, d*G + g] = x[b, d].
    rows = jnp.arange(D_pad)[:, None]
    cols = jnp.arange(K_pad)[None, :]
    expand = (((cols // G) == rows) & (cols < K)).astype(compute_dtype)

    # Per fused column RBF center: centers[0, d*G + g] = grid[g].
    colv = jnp.arange(K_pad)
    centers = jnp.where(colv < K, grid.astype(jnp.float32)[colv % G], 0.0)
    centers = centers.reshape(1, K_pad)

    # Base linear, transposed so the kernel does x @ W directly.
    bw = jnp.pad(base_weight.astype(jnp.float32).T,
                 ((0, D_pad - D), (0, Dout_pad - Dout))).astype(compute_dtype)
    bb = jnp.pad(base_bias.astype(jnp.float32),
                 (0, Dout_pad - Dout)).reshape(1, Dout_pad)

    return dict(centers=centers, expand=expand, spline_w=sw, base_w=bw,
                base_b=bb, dims=(D, Dout, G, D_pad, K_pad, Dout_pad),
                compute_dtype=compute_dtype, elementwise_dtype=elementwise_dtype)


def rbf_kan_layer_packed(x, packed, *, alpha, batch_tile=1024, k_tile=1024,
                         vmem_limit_bytes=None):
    """RBFKANLayer forward (gaussian RBF + base update) on packed params."""
    D, Dout, G, D_pad, K_pad, Dout_pad = packed["dims"]
    B = x.shape[0]
    assert x.shape == (B, D)
    ew_dtype = packed["elementwise_dtype"]

    kind = _device_kind()
    # Stream x / out in bf16 when the caller already uses bf16 (HBM-bound for
    # small D/Dout); otherwise keep f32.
    if x.dtype == jnp.bfloat16:
        stream_dtype, out_dtype, mult = jnp.bfloat16, jnp.bfloat16, 16
    else:
        stream_dtype, out_dtype, mult = jnp.float32, jnp.float32, 8

    # v7x has 2 TensorCores: make sure the "parallel" batch axis has >= 2
    # programs when the batch is large enough to split.
    min_programs = 2 if ("v7" in kind and _round_up(B, mult) >= 2 * mult) else 1
    Bt = _pick_batch_tile(B, batch_tile, mult=mult, min_programs=min_programs)
    B_pad = _round_up(B, Bt)
    Kt = _pick_k_tile(K_pad, k_tile)

    if vmem_limit_bytes is None:
        vmem_limit_bytes = _default_vmem_limit_bytes()

    x_pad = jnp.pad(x.astype(stream_dtype), ((0, B_pad - B), (0, D_pad - D)))

    # TODO(synk): inv_alpha is baked as a Python constant; if alpha ever
    # becomes a traced/learned parameter it should be passed as an SMEM scalar.
    kernel = functools.partial(_rbf_kan_kernel,
                               inv_alpha=float(1.0 / alpha),
                               ew_dtype=ew_dtype)

    out = pl.pallas_call(
        kernel,
        out_shape=jax.ShapeDtypeStruct((B_pad, Dout_pad), out_dtype),
        grid=(B_pad // Bt, K_pad // Kt),
        in_specs=[
            pl.BlockSpec((Bt, D_pad), lambda i, k: (i, 0)),        # x tile
            pl.BlockSpec((1, Kt), lambda i, k: (0, k)),            # centers
            pl.BlockSpec((D_pad, Kt), lambda i, k: (0, k)),        # expansion E
            pl.BlockSpec((Kt, Dout_pad), lambda i, k: (k, 0)),     # spline W tile
            pl.BlockSpec((D_pad, Dout_pad), lambda i, k: (0, 0)),  # base W
            pl.BlockSpec((1, Dout_pad), lambda i, k: (0, 0)),      # base bias
        ],
        out_specs=pl.BlockSpec((Bt, Dout_pad), lambda i, k: (i, 0)),
        scratch_shapes=[pltpu.VMEM((Bt, Dout_pad), jnp.float32)],
        compiler_params=pltpu.CompilerParams(
            dimension_semantics=("parallel", "arbitrary"),
            vmem_limit_bytes=vmem_limit_bytes,
        ),
    )(x_pad, packed["centers"], packed["expand"], packed["spline_w"],
      packed["base_w"], packed["base_b"])

    return out[:B, :Dout].astype(x.dtype)


def rbf_kan_layer(x, grid, spline_weight, base_weight, base_bias, *, alpha,
                  compute_dtype=jnp.bfloat16, elementwise_dtype=None,
                  batch_tile=1024, k_tile=1024, vmem_limit_bytes=None):
    """Convenience wrapper: pack params then run the kernel (for real use,
    call pack_rbf_kan_params once at init and rbf_kan_layer_packed per step)."""
    packed = pack_rbf_kan_params(grid, spline_weight, base_weight, base_bias,
                                 compute_dtype=compute_dtype,
                                 elementwise_dtype=elementwise_dtype)
    return rbf_kan_layer_packed(x, packed, alpha=alpha, batch_tile=batch_tile,
                                k_tile=k_tile, vmem_limit_bytes=vmem_limit_bytes)


def reference_forward(x, grid, spline_weight, base_weight, base_bias, *, alpha):
    """Pure-JAX f32 reference mirroring the PyTorch module exactly."""
    dist = x[..., None] - grid                               # (B, D, G)
    basis = jnp.exp(-((dist / alpha) ** 2))
    rbf = basis.reshape(x.shape[0], -1) @ spline_weight      # (B, Dout)
    silu = x * jax.nn.sigmoid(x)
    base = silu @ base_weight.T + base_bias
    return rbf + base


if __name__ == "__main__":
    # Small, module-consistent shapes (the kernel itself scales batch / K via
    # the 2-D grid; realistic perf needs batch/feature dims in the 100s).
    input_dim = 32
    output_dim = 16
    num_grids = 8
    grid_min, grid_max = -2.0, 2.0
    spline_weight_init_scale = 0.1
    batch = 8

    alpha = (grid_max - grid_min) / (num_grids - 1)

    key = jax.random.PRNGKey(0)
    k_x, k_sw, k_bw, k_bb = jax.random.split(key, 4)

    grid = jnp.linspace(grid_min, grid_max, num_grids, dtype=jnp.float32)
    spline_weight = (jax.random.normal(
        k_sw, (input_dim * num_grids, output_dim), dtype=jnp.float32)
        * spline_weight_init_scale)
    lim = 1.0 / (input_dim ** 0.5)   # nn.Linear default uniform init bound
    base_weight = jax.random.uniform(k_bw, (output_dim, input_dim),
                                     minval=-lim, maxval=lim, dtype=jnp.float32)
    base_bias = jax.random.uniform(k_bb, (output_dim,),
                                   minval=-lim, maxval=lim, dtype=jnp.float32)
    x = jax.random.normal(k_x, (batch, input_dim), dtype=jnp.float32)

    ref = reference_forward(x, grid, spline_weight, base_weight, base_bias,
                            alpha=alpha)

    # 1) f32 matmul operands + f32 elementwise: structural check against the
    #    pure-JAX reference (tolerance also covers TPU MXU f32 rounding).
    out_f32 = jax.block_until_ready(
        rbf_kan_layer(x, grid, spline_weight, base_weight, base_bias,
                      alpha=alpha, compute_dtype=jnp.float32,
                      elementwise_dtype=jnp.float32))
    assert out_f32.shape == (batch, output_dim)
    assert jnp.allclose(out_f32, ref, atol=2e-2, rtol=2e-2), \
        "f32 kernel mismatch vs reference"

    # 2) Default fast path: bf16 matmul operands with f32 MXU accumulation,
    #    bf16 elementwise on v6e/v7x (f32 on v5e and older).  Params packed
    #    once (init-time) and reused via the packed entry point.
    packed = pack_rbf_kan_params(grid, spline_weight, base_weight, base_bias,
                                 compute_dtype=jnp.bfloat16)
    out_fast = jax.block_until_ready(
        rbf_kan_layer_packed(x, packed, alpha=alpha))
    assert out_fast.shape == (batch, output_dim)
    assert jnp.allclose(out_fast, ref, atol=1e-1, rtol=1e-1), \
        "bf16 fast-path kernel mismatch vs reference"

    print("KERNEL_OK")
</pallas_src>

<mosaic_0001>
module attributes {stable_mosaic.version = 11 : i64} {
  func.func @_rbf_kan_kernel(%arg0: i32, %arg1: i32, %arg2: memref<8x128xf32, #tpu.memory_space<vmem>>, %arg3: memref<1x256xf32, #tpu.memory_space<vmem>>, %arg4: memref<128x256xf32, #tpu.memory_space<vmem>>, %arg5: memref<256x128xf32, #tpu.memory_space<vmem>>, %arg6: memref<128x128xf32, #tpu.memory_space<vmem>>, %arg7: memref<1x128xf32, #tpu.memory_space<vmem>>, %arg8: memref<8x128xf32, #tpu.memory_space<vmem>>, %arg9: memref<8x128xf32, #tpu.memory_space<vmem>>) attributes {dimension_semantics = [#tpu.dimension_semantics<parallel>, #tpu.dimension_semantics<arbitrary>], iteration_bounds = array<i64: 1, 1>, scalar_prefetch = 0 : i64, scratch_operands = 1 : i64, tpu.core_type = #tpu.core_type<tc>, window_params = [{transform_indices = @transform_0, window_bounds = array<i64: 8, 128>}, {transform_indices = @transform_1, window_bounds = array<i64: 1, 256>}, {transform_indices = @transform_2, window_bounds = array<i64: 128, 256>}, {transform_indices = @transform_3, window_bounds = array<i64: 256, 128>}, {pipeline_mode = #tpu.pipeline_mode<synchronous>, transform_indices = @transform_4, window_bounds = array<i64: 128, 128>}, {pipeline_mode = #tpu.pipeline_mode<synchronous>, transform_indices = @transform_5, window_bounds = array<i64: 1, 128>}, {transform_indices = @transform_6, window_bounds = array<i64: 8, 128>}]} {
    %c0_i32 = arith.constant 0 : i32
    %0 = arith.cmpi eq, %arg1, %c0_i32 : i32
    %1 = arith.extui %0 : i1 to i32
    %c0_i32_0 = arith.constant 0 : i32
    %2 = arith.cmpi ne, %1, %c0_i32_0 : i32
    scf.if %2 {
      %c0_17 = arith.constant 0 : index
      %c0_18 = arith.constant 0 : index
      %23 = vector.load %arg2[%c0_17, %c0_18] : memref<8x128xf32, #tpu.memory_space<vmem>>, vector<8x128xf32>
      %24 = arith.negf %23 : vector<8x128xf32>
      %25 = math.exp %24 : vector<8x128xf32>
      %cst_19 = arith.constant 1.000000e+00 : f32
      %26 = vector.broadcast %cst_19 : f32 to vector<8x128xf32>
      %27 = arith.addf %26, %25 : vector<8x128xf32>
      %28 = arith.divf %26, %27 : vector<8x128xf32>
      %29 = arith.mulf %23, %28 : vector<8x128xf32>
      %c0_20 = arith.constant 0 : index
      %c0_21 = arith.constant 0 : index
      %30 = vector.load %arg6[%c0_20, %c0_21] : memref<128x128xf32, #tpu.memory_space<vmem>>, vector<128x128xf32>
      %cst_22 = arith.constant dense<0.000000e+00> : vector<8x128xf32>
      %31 = tpu.matmul %29, %30, %cst_22 {dimension_numbers = #tpu.dot_dimension_numbers<[1], [0], [0], [1], [0, 0, 1, 1], [], []>} : vector<8x128xf32>, vector<128x128xf32>, vector<8x128xf32> -> vector<8x128xf32>
      %c0_23 = arith.constant 0 : index
      %c0_24 = arith.constant 0 : index
      %32 = vector.load %arg7[%c0_23, %c0_24] : memref<1x128xf32, #tpu.memory_space<vmem>>, vector<1x128xf32>
      %33 = vector.broadcast %32 : vector<1x128xf32> to vector<8x128xf32>
      %34 = arith.addf %31, %33 : vector<8x128xf32>
      %c0_25 = arith.constant 0 : index
      %c0_26 = arith.constant 0 : index
      %35 = vector.load %arg9[%c0_25, %c0_26] : memref<8x128xf32, #tpu.memory_space<vmem>>, vector<8x128xf32>
      tpu.vector_store %arg9[%c0_25, %c0_26], %34 {strides = array<i32>} : memref<8x128xf32, #tpu.memory_space<vmem>>, vector<8x128xf32>,
    } else {
    }
    %c0 = arith.constant 0 : index
    %c0_1 = arith.constant 0 : index
    %3 = vector.load %arg2[%c0, %c0_1] : memref<8x128xf32, #tpu.memory_space<vmem>>, vector<8x128xf32>
    %c0_2 = arith.constant 0 : index
    %c0_3 = arith.constant 0 : index
    %4 = vector.load %arg4[%c0_2, %c0_3] : memref<128x256xf32, #tpu.memory_space<vmem>>, vector<128x256xf32>
    %cst = arith.constant dense<0.000000e+00> : vector<8x256xf32>
    %5 = tpu.matmul %3, %4, %cst {dimension_numbers = #tpu.dot_dimension_numbers<[1], [0], [0], [1], [0, 0, 1, 1], [], []>} : vector<8x128xf32>, vector<128x256xf32>, vector<8x256xf32> -> vector<8x256xf32>
    %c0_4 = arith.constant 0 : index
    %c0_5 = arith.constant 0 : index
    %6 = vector.load %arg3[%c0_4, %c0_5] : memref<1x256xf32, #tpu.memory_space<vmem>>, vector<1x256xf32>
    %7 = vector.broadcast %6 : vector<1x256xf32> to vector<8x256xf32>
    %8 = arith.subf %5, %7 : vector<8x256xf32>
    %cst_6 = arith.constant 1.750000e+00 : f32
    %9 = vector.broadcast %cst_6 : f32 to vector<8x256xf32>
    %10 = arith.mulf %8, %9 : vector<8x256xf32>
    %11 = arith.mulf %10, %10 : vector<8x256xf32>
    %cst_7 = arith.constant 0.000000e+00 : f32
    %12 = vector.broadcast %cst_7 : f32 to vector<8x256xf32>
    %13 = arith.subf %12, %11 : vector<8x256xf32>
    %14 = math.exp %13 : vector<8x256xf32>
    %c0_8 = arith.constant 0 : index
    %c0_9 = arith.constant 0 : index
    %15 = vector.load %arg9[%c0_8, %c0_9] : memref<8x128xf32, #tpu.memory_space<vmem>>, vector<8x128xf32>
    %c0_10 = arith.constant 0 : index
    %c0_11 = arith.constant 0 : index
    %16 = vector.load %arg5[%c0_10, %c0_11] : memref<256x128xf32, #tpu.memory_space<vmem>>, vector<256x128xf32>
    %cst_12 = arith.constant dense<0.000000e+00> : vector<8x128xf32>
    %17 = tpu.matmul %14, %16, %cst_12 {dimension_numbers = #tpu.dot_dimension_numbers<[1], [0], [0], [1], [0, 0, 1, 1], [], []>} : vector<8x256xf32>, vector<256x128xf32>, vector<8x128xf32> -> vector<8x128xf32>
    %18 = arith.addf %15, %17 : vector<8x128xf32>
    %c0_13 = arith.constant 0 : index
    %c0_14 = arith.constant 0 : index
    %19 = vector.load %arg9[%c0_13, %c0_14] : memref<8x128xf32, #tpu.memory_space<vmem>>, vector<8x128xf32>
    tpu.vector_store %arg9[%c0_13, %c0_14], %18 {strides = array<i32>} : memref<8x128xf32, #tpu.memory_space<vmem>>, vector<8x128xf32>,
    %c0_i32_15 = arith.constant 0 : i32
    %20 = arith.cmpi eq, %arg1, %c0_i32_15 : i32
    %21 = arith.extui %20 : i1 to i32
    %c0_i32_16 = arith.constant 0 : i32
    %22 = arith.cmpi ne, %21, %c0_i32_16 : i32
    scf.if %22 {
      %c0_17 = arith.constant 0 : index
      %c0_18 = arith.constant 0 : index
      %23 = vector.load %arg9[%c0_17, %c0_18] : memref<8x128xf32, #tpu.memory_space<vmem>>, vector<8x128xf32>
      %c0_19 = arith.constant 0 : index
      %c0_20 = arith.constant 0 : index
      %24 = vector.load %arg8[%c0_19, %c0_20] : memref<8x128xf32, #tpu.memory_space<vmem>>, vector<8x128xf32>
      tpu.vector_store %arg8[%c0_19, %c0_20], %23 {strides = array<i32>} : memref<8x128xf32, #tpu.memory_space<vmem>>, vector<8x128xf32>,
    } else {
    }
    return
  }
  func.func @transform_0(%arg0: i32, %arg1: i32) -> (i32, i32) {
    %c0_i32 = arith.constant 0 : i32
    %c0_i32_0 = arith.constant 0 : i32
    return %arg0, %c0_i32 : i32, i32
  }
  func.func @transform_1(%arg0: i32, %arg1: i32) -> (i32, i32) {
    %c0_i32 = arith.constant 0 : i32
    %c0_i32_0 = arith.constant 0 : i32
    return %c0_i32, %arg1 : i32, i32
  }
  func.func @transform_2(%arg0: i32, %arg1: i32) -> (i32, i32) {
    %c0_i32 = arith.constant 0 : i32
    %c0_i32_0 = arith.constant 0 : i32
    return %c0_i32, %arg1 : i32, i32
  }
  func.func @transform_3(%arg0: i32, %arg1: i32) -> (i32, i32) {
    %c0_i32 = arith.constant 0 : i32
    %c0_i32_0 = arith.constant 0 : i32
    return %arg1, %c0_i32 : i32, i32
  }
  func.func @transform_4(%arg0: i32, %arg1: i32) -> (i32, i32) {
    %c0_i32 = arith.constant 0 : i32
    %c0_i32_0 = arith.constant 0 : i32
    %c0_i32_1 = arith.constant 0 : i32
    return %c0_i32, %c0_i32_0 : i32, i32
  }
  func.func @transform_5(%arg0: i32, %arg1: i32) -> (i32, i32) {
    %c0_i32 = arith.constant 0 : i32
    %c0_i32_0 = arith.constant 0 : i32
    %c0_i32_1 = arith.constant 0 : i32
    return %c0_i32, %c0_i32_0 : i32, i32
  }
  func.func @transform_6(%arg0: i32, %arg1: i32) -> (i32, i32) {
    %c0_i32 = arith.constant 0 : i32
    %c0_i32_0 = arith.constant 0 : i32
    return %arg0, %c0_i32 : i32, i32
  }
}

</mosaic_0001>

<llo_original>
// kernel: tpu_custom_call.1
$region0: #{tpu_custom_call.1}
  #allocation0 [shape = 'u32[]', space=smem, size = 0x4, offset = 0x4, fixed_abs, tag = 'smem constant byte address 0x4 - core index']
  #allocation1 [shape = 'u32[144,128]{1,0:T(1,128)}', space=vmem, size = 0x12000, scoped, tag = 'internal scratch']
  #allocation2 [shape = 'f32[8,128]{1,0:T(8,128)}', space=vmem, size = 0x1000, scoped, tag = 'scratch operand']
  %s0 = inlined_call_operand.hbm [shape: f32[8,128], index: 0, kind: input, shape index: {}]
  %s1 = inlined_call_operand.vmem [shape: f32[1,256], index: 1, kind: input, shape index: {}]
  %s2 = inlined_call_operand.hbm [shape: f32[128,256], index: 2, kind: input, shape index: {}]
  %s3 = inlined_call_operand.hbm [shape: f32[256,128], index: 3, kind: input, shape index: {}]
  %s4 = inlined_call_operand.hbm [shape: f32[128,128], index: 4, kind: input, shape index: {}]
  %s5 = inlined_call_operand.vmem [shape: f32[1,128], index: 5, kind: input, shape index: {}]
  %s6 = inlined_call_operand.hbm [shape: f32[8,128], index: 6, kind: output, shape index: {}]
  %s7 = sld [smem:[#allocation0]]
  $region58: #{tpu_custom_call.1} parent=0
    _
  %s9 = ssub.s32 1, %s7
  %s10 = scalar_select 0, %s9, %s7
  $region1: #{tpu_custom_call.1} parent=0
    #allocation3 [shape = 'u8[4096]{0}', space=vmem, size = 0x1000, scoped, tag = 'input window, operand 0, single buffered']
    #allocation4 [shape = 's32[1]{0}', space=sflag, size = 0x4, scoped, tag = 'scoped memory for tpu_custom_call.1']
    #allocation5 [shape = 's32[1]{0}', space=sflag, size = 0x4, scoped, tag = 'scoped memory for tpu_custom_call.1']
    #allocation6 [shape = 'u8[131072]{0}', space=vmem, size = 0x20000, scoped, tag = 'input window, operand 2, single buffered']
    #allocation7 [shape = 's32[1]{0}', space=sflag, size = 0x4, scoped, tag = 'scoped memory for tpu_custom_call.1']
    #allocation8 [shape = 'u8[131072]{0}', space=vmem, size = 0x20000, scoped, tag = 'input window, operand 3, single buffered']
    #allocation9 [shape = 'u8[65536]{0}', space=vmem, size = 0x10000, scoped, tag = 'input window, operand 4, single buffered']
    #allocation10 [shape = 's32[1]{0}', space=sflag, size = 0x4, scoped, tag = 'scoped memory for tpu_custom_call.1']
    #allocation11 [shape = 'u8[4096]{0}', space=vmem, size = 0x1000, scoped, tag = 'output window, operand 0, single buffered']
    %11 = vsyncpa [#allocation4], 0
    %12 = vsyncpa [#allocation7], 0
    %13 = vsyncpa [#allocation10], 0
    %14 = vsyncpa [#allocation5], 0
    // Predicated region
    $region2: #{tpu_custom_call.1} parent=1 // pred_check
      _
    $region3: #{tpu_custom_call.1} parent=1 // pred_check_branch
      %16 = sbr.rel (0) target = $region5
    $region4: #{tpu_custom_call.1} parent=1 // pred_region
      %s18 = ssub.s32 128, 128
      %19 = vsyncadd [#allocation4], %s18
      %s21 = sshll.u32 [#allocation3], 4
      %s22 = int_to_ptr.vmem [resolvable:$true] %s21
      %24 = dma.hbm_to_vmem [thread:$0]  %s0, 128, %s22, [#allocation4]
    $region5: #{tpu_custom_call.1} parent=1 // pred_fallthru
      _
    // Predicated region
    $region6: #{tpu_custom_call.1} parent=1 // pred_check
      _
    $region7: #{tpu_custom_call.1} parent=1 // pred_check_branch
      %26 = sbr.rel (0) target = $region9
    $region8: #{tpu_custom_call.1} parent=1 // pred_region
      _
    $region9: #{tpu_custom_call.1} parent=1 // pred_fallthru
      _
    // Predicated region
    $region10: #{tpu_custom_call.1} parent=1 // pred_check
      _
    $region11: #{tpu_custom_call.1} parent=1 // pred_check_branch
      %28 = sbr.rel (0) target = $region13
    $region12: #{tpu_custom_call.1} parent=1 // pred_region
      %s30 = ssub.s32 4096, 4096
      %31 = vsyncadd [#allocation7], %s30
      %s32 = sshll.u32 [#allocation6], 4
      %s33 = int_to_ptr.vmem [resolvable:$true] %s32
      %38 = dma.hbm_to_vmem [thread:$0]  %s2, 4096, %s33, [#allocation7], 256, 256, 16
    $region13: #{tpu_custom_call.1} parent=1 // pred_fallthru
      _
    // Predicated region
    $region14: #{tpu_custom_call.1} parent=1 // pred_check
      _
    $region15: #{tpu_custom_call.1} parent=1 // pred_check_branch
      %40 = sbr.rel (0) target = $region17
    $region16: #{tpu_custom_call.1} parent=1 // pred_region
      %s42 = ssub.s32 4096, 4096
      %43 = vsyncadd [#allocation7], %s42
      %s44 = sshll.u32 [#allocation8], 4
      %s45 = int_to_ptr.vmem [resolvable:$true] %s44
      %50 = dma.hbm_to_vmem [thread:$0]  %s3, 4096, %s45, [#allocation7], 128, 128, 8
    $region17: #{tpu_custom_call.1} parent=1 // pred_fallthru
      _
    // Predicated region
    $region18: #{tpu_custom_call.1} parent=1 // pred_check
      _
    $region19: #{tpu_custom_call.1} parent=1 // pred_check_branch
      %52 = sbr.rel (0) target = $region21
    $region20: #{tpu_custom_call.1} parent=1 // pred_region
      %s54 = ssub.s32 2048, 2048
      %55 = vsyncadd [#allocation10], %s54
      %s56 = sshll.u32 [#allocation9], 4
      %s57 = int_to_ptr.vmem [resolvable:$true] %s56
      %62 = dma.hbm_to_vmem [thread:$0]  %s4, 2048, %s57, [#allocation10], 128, 128, 8
    $region21: #{tpu_custom_call.1} parent=1 // pred_fallthru
      _
    // Predicated region
    $region22: #{tpu_custom_call.1} parent=1 // pred_check
      _
    $region23: #{tpu_custom_call.1} parent=1 // pred_check_branch
      %64 = sbr.rel (0) target = $region25
    $region24: #{tpu_custom_call.1} parent=1 // pred_region
      _
    $region25: #{tpu_custom_call.1} parent=1 // pred_fallthru
      _
    // Predicated region
    $region26: #{tpu_custom_call.1} parent=1 // pred_check
      _
    $region27: #{tpu_custom_call.1} parent=1 // pred_check_branch
      %66 = sbr.rel (0) target = $region29
    $region28: #{tpu_custom_call.1} parent=1 // pred_region
      %67 = dma.done [#allocation4], 128
    $region29: #{tpu_custom_call.1} parent=1 // pred_fallthru
      _
    // Predicated region
    $region30: #{tpu_custom_call.1} parent=1 // pred_check
      _
    $region31: #{tpu_custom_call.1} parent=1 // pred_check_branch
      %69 = sbr.rel (0) target = $region33
    $region32: #{tpu_custom_call.1} parent=1 // pred_region
      %70 = dma.done [#allocation7], 4096
    $region33: #{tpu_custom_call.1} parent=1 // pred_fallthru
      _
    // Predicated region
    $region34: #{tpu_custom_call.1} parent=1 // pred_check
      _
    $region35: #{tpu_custom_call.1} parent=1 // pred_check_branch
      %72 = sbr.rel (0) target = $region37
    $region36: #{tpu_custom_call.1} parent=1 // pred_region
      %73 = dma.done [#allocation7], 4096
    $region37: #{tpu_custom_call.1} parent=1 // pred_fallthru
      _
    // Predicated region
    $region38: #{tpu_custom_call.1} parent=1 // pred_check
      _
    $region39: #{tpu_custom_call.1} parent=1 // pred_check_branch
      %75 = sbr.rel (0) target = $region41
    $region40: #{tpu_custom_call.1} parent=1 // pred_region
      %76 = dma.done [#allocation10], 2048
    $region41: #{tpu_custom_call.1} parent=1 // pred_fallthru
      _
    %p77 = scmp.eq.s32.totalorder 0, 0
    // Predicated region
    $region42: #{tpu_custom_call.1} parent=1 // pred_check
      %p78 = pneg %p77
    $region43: #{tpu_custom_call.1} parent=1 // pred_check_branch
      %80 = sbr.rel (%p78) target = $region45
    $region44: #{tpu_custom_call.1} parent=1 // pred_region
      %v81 = vld [vmem:[#allocation3] sm:$0xff]
      %v82 = vxor.u32 %v81, 2147483648
      %v83 = vmul.f32 %v82, 1.442695
      %v84 = vpow.pop %v83
      %v85 = vadd.f32 %v84, 1.0
      %v86 = vrcp.pop %v85
      %v87 = vmul.f32 1.0, %v86
      %v88 = vmul.f32 %v81, %v87
      %v89 = vld [vmem:[#allocation9] sm:$0xff]
      %v90 = vld [vmem:[#allocation9 + $0x8] sm:$0xff]
      %v91 = vld [vmem:[#allocation9 + $0x10] sm:$0xff]
      %v92 = vld [vmem:[#allocation9 + $0x18] sm:$0xff]
      %v93 = vld [vmem:[#allocation9 + $0x20] sm:$0xff]
      %v94 = vld [vmem:[#allocation9 + $0x28] sm:$0xff]
      %v95 = vld [vmem:[#allocation9 + $0x30] sm:$0xff]
      %v96 = vld [vmem:[#allocation9 + $0x38] sm:$0xff]
      %v97 = vld [vmem:[#allocation9 + $0x40] sm:$0xff]
      %v98 = vld [vmem:[#allocation9 + $0x48] sm:$0xff]
      %v99 = vld [vmem:[#allocation9 + $0x50] sm:$0xff]
      %v100 = vld [vmem:[#allocation9 + $0x58] sm:$0xff]
      %v101 = vld [vmem:[#allocation9 + $0x60] sm:$0xff]
      %v102 = vld [vmem:[#allocation9 + $0x68] sm:$0xff]
      %v103 = vld [vmem:[#allocation9 + $0x70] sm:$0xff]
      %v104 = vld [vmem:[#allocation9 + $0x78] sm:$0xff]
      %v105 = vld [vmem:[%s5] sm:$0x1]
      %v107 = vlaneseq
      %v108 = vshrl.u32 %v107, 7
      %v109 = vsub.s32 0, %v108
      %v110 = vrot.slane %v105, %v109
      %112 = vmatprep.subr.mxu0 0.0
      %113 = vmatpush1.msra.mxu0 %v89
      %114 = vmatprep.subr.mxu0 0.0
      %115 = vmatpush1.msra.mxu0 %v90
      %116 = vmatprep.subr.mxu0 0.0
      %117 = vmatpush1.msra.mxu0 %v91
      %118 = vmatprep.subr.mxu0 0.0
      %119 = vmatpush1.msra.mxu0 %v92
      %120 = vmatprep.subr.mxu0 0.0
      %121 = vmatpush1.msra.mxu0 %v93
      %122 = vmatprep.subr.mxu0 0.0
      %123 = vmatpush1.msra.mxu0 %v94
      %124 = vmatprep.subr.mxu0 0.0
      %125 = vmatpush1.msra.mxu0 %v95
      %126 = vmatprep.subr.mxu0 0.0
      %127 = vmatpush1.msra.mxu0 %v96
      %128 = vmatprep.subr.mxu0 0.0
      %129 = vmatpush1.msra.mxu0 %v97
      %130 = vmatprep.subr.mxu0 0.0
      %131 = vmatpush1.msra.mxu0 %v98
      %132 = vmatprep.subr.mxu0 0.0
      %133 = vmatpush1.msra.mxu0 %v99
      %134 = vmatprep.subr.mxu0 0.0
      %135 = vmatpush1.msra.mxu0 %v100
      %136 = vmatprep.subr.mxu0 0.0
      %137 = vmatpush1.msra.mxu0 %v101
      %138 = vmatprep.subr.mxu0 0.0
      %139 = vmatpush1.msra.mxu0 %v102
      %140 = vmatprep.subr.mxu0 0.0
      %141 = vmatpush1.msra.mxu0 %v103
      %142 = vmatprep.subr.mxu0 0.0
      %143 = vmatpush1.msra.mxu0 %v104
      %144 = vmatprep.subr.mxu0 0.0
      %145 = vmatpush1.msra.mxu0 0.0
      %146 = vmatprep.subr.mxu0 0.0
      %147 = vmatpush1.msra.mxu0 0.0
      %148 = vmatprep.subr.mxu0 0.0
      %149 = vmatpush1.msra.mxu0 0.0
      %150 = vmatprep.subr.mxu0 0.0
      %151 = vmatpush1.msra.mxu0 0.0
      %152 = vmatprep.subr.mxu0 0.0
      %153 = vmatpush1.msra.mxu0 0.0
      %154 = vmatprep.subr.mxu0 0.0
      %155 = vmatpush1.msra.mxu0 0.0
      %156 = vmatprep.subr.mxu0 0.0
      %157 = vmatpush1.msra.mxu0 0.0
      %158 = vmatprep.subr.mxu0 0.0
      %159 = vmatpush1.msra.mxu0 0.0
      %160 = vmatprep.subr.mxu0 0.0
      %161 = vmatpush1.msra.mxu0 0.0
      %162 = vmatprep.subr.mxu0 0.0
      %163 = vmatpush1.msra.mxu0 0.0
      %164 = vmatprep.subr.mxu0 0.0
      %165 = vmatpush1.msra.mxu0 0.0
      %166 = vmatprep.subr.mxu0 0.0
      %167 = vmatpush1.msra.mxu0 0.0
      %168 = vmatprep.subr.mxu0 0.0
      %169 = vmatpush1.msra.mxu0 0.0
      %170 = vmatprep.subr.mxu0 0.0
      %171 = vmatpush1.msra.mxu0 0.0
      %172 = vmatprep.subr.mxu0 0.0
      %173 = vmatpush1.msra.mxu0 0.0
      %174 = vmatprep.subr.mxu0 0.0
      %175 = vmatpush1.msra.mxu0 0.0
      %176 = vmatprep.mubr.f32.mxu0 0.0
      %177 = vmatmul.mubr.f32.gmra.mrb[0].mxu0 %v88
      %v178 = vpop.f32.mrb[0].mxu0
      %v179 = vadd.f32 %v110, %v178
      %v180 = vpop.f32.mrb[0].mxu0
      %181 = vdwg.mxu0
      %182 = vst [vmem:[#allocation2] sm:$0xff] %v179
    $region45: #{tpu_custom_call.1} parent=1 // pred_fallthru
      _
    %v183 = vld [vmem:[#allocation3] sm:$0xff]
    %v184 = vld [vmem:[#allocation6] sm:$0xff]
    %v185 = vld [vmem:[#allocation6 + $0x8] sm:$0xff]
    %v186 = vld [vmem:[#allocation6 + $0x10] sm:$0xff]
    %v187 = vld [vmem:[#allocation6 + $0x18] sm:$0xff]
    %v188 = vld [vmem:[#allocation6 + $0x20] sm:$0xff]
    %v189 = vld [vmem:[#allocation6 + $0x28] sm:$0xff]
    %v190 = vld [vmem:[#allocation6 + $0x30] sm:$0xff]
    %v191 = vld [vmem:[#allocation6 + $0x38] sm:$0xff]
    %v192 = vld [vmem:[#allocation6 + $0x40] sm:$0xff]
    %v193 = vld [vmem:[#allocation6 + $0x48] sm:$0xff]
    %v194 = vld [vmem:[#allocation6 + $0x50] sm:$0xff]
    %v195 = vld [vmem:[#allocation6 + $0x58] sm:$0xff]
    %v196 = vld [vmem:[#allocation6 + $0x60] sm:$0xff]
    %v197 = vld [vmem:[#allocation6 + $0x68] sm:$0xff]
    %v198 = vld [vmem:[#allocation6 + $0x70] sm:$0xff]
    %v199 = vld [vmem:[#allocation6 + $0x78] sm:$0xff]
    %v200 = vld [vmem:[#allocation6 + $0x80] sm:$0xff]
    %v201 = vld [vmem:[#allocation6 + $0x88] sm:$0xff]
    %v202 = vld [vmem:[#allocation6 + $0x90] sm:$0xff]
    %v203 = vld [vmem:[#allocation6 + $0x98] sm:$0xff]
    %v204 = vld [vmem:[#allocation6 + $0xa0] sm:$0xff]
    %v205 = vld [vmem:[#allocation6 + $0xa8] sm:$0xff]
    %v206 = vld [vmem:[#allocation6 + $0xb0] sm:$0xff]
    %v207 = vld [vmem:[#allocation6 + $0xb8] sm:$0xff]
    %v208 = vld [vmem:[#allocation6 + $0xc0] sm:$0xff]
    %v209 = vld [vmem:[#allocation6 + $0xc8] sm:$0xff]
    %v210 = vld [vmem:[#allocation6 + $0xd0] sm:$0xff]
    %v211 = vld [vmem:[#allocation6 + $0xd8] sm:$0xff]
    %v212 = vld [vmem:[#allocation6 + $0xe0] sm:$0xff]
    %v213 = vld [vmem:[#allocation6 + $0xe8] sm:$0xff]
    %v214 = vld [vmem:[#allocation6 + $0xf0] sm:$0xff]
    %v215 = vld [vmem:[#allocation6 + $0xf8] sm:$0xff]
    %216 = vmatprep.subr.mxu0 %v185
    %217 = vmatpush1.msra.mxu0 %v184
    %218 = vmatprep.subr.mxu0 %v187
    %219 = vmatpush1.msra.mxu0 %v186
    %220 = vmatprep.subr.mxu0 %v189
    %221 = vmatpush1.msra.mxu0 %v188
    %222 = vmatprep.subr.mxu0 %v191
    %223 = vmatpush1.msra.mxu0 %v190
    %224 = vmatprep.subr.mxu0 %v193
    %225 = vmatpush1.msra.mxu0 %v192
    %226 = vmatprep.subr.mxu0 %v195
    %227 = vmatpush1.msra.mxu0 %v194
    %228 = vmatprep.subr.mxu0 %v197
    %229 = vmatpush1.msra.mxu0 %v196
    %230 = vmatprep.subr.mxu0 %v199
    %231 = vmatpush1.msra.mxu0 %v198
    %232 = vmatprep.subr.mxu0 %v201
    %233 = vmatpush1.msra.mxu0 %v200
    %234 = vmatprep.subr.mxu0 %v203
    %235 = vmatpush1.msra.mxu0 %v202
    %236 = vmatprep.subr.mxu0 %v205
    %237 = vmatpush1.msra.mxu0 %v204
    %238 = vmatprep.subr.mxu0 %v207
    %239 = vmatpush1.msra.mxu0 %v206
    %240 = vmatprep.subr.mxu0 %v209
    %241 = vmatpush1.msra.mxu0 %v208
    %242 = vmatprep.subr.mxu0 %v211
    %243 = vmatpush1.msra.mxu0 %v210
    %244 = vmatprep.subr.mxu0 %v213
    %245 = vmatpush1.msra.mxu0 %v212
    %246 = vmatprep.subr.mxu0 %v215
    %247 = vmatpush1.msra.mxu0 %v214
    %248 = vmatprep.subr.mxu0 0.0
    %249 = vmatpush1.msra.mxu0 0.0
    %250 = vmatprep.subr.mxu0 0.0
    %251 = vmatpush1.msra.mxu0 0.0
    %252 = vmatprep.subr.mxu0 0.0
    %253 = vmatpush1.msra.mxu0 0.0
    %254 = vmatprep.subr.mxu0 0.0
    %255 = vmatpush1.msra.mxu0 0.0
    %256 = vmatprep.subr.mxu0 0.0
    %257 = vmatpush1.msra.mxu0 0.0
    %258 = vmatprep.subr.mxu0 0.0
    %259 = vmatpush1.msra.mxu0 0.0
    %260 = vmatprep.subr.mxu0 0.0
    %261 = vmatpush1.msra.mxu0 0.0
    %262 = vmatprep.subr.mxu0 0.0
    %263 = vmatpush1.msra.mxu0 0.0
    %264 = vmatprep.subr.mxu0 0.0
    %265 = vmatpush1.msra.mxu0 0.0
    %266 = vmatprep.subr.mxu0 0.0
    %267 = vmatpush1.msra.mxu0 0.0
    %268 = vmatprep.subr.mxu0 0.0
    %269 = vmatpush1.msra.mxu0 0.0
    %270 = vmatprep.subr.mxu0 0.0
    %271 = vmatpush1.msra.mxu0 0.0
    %272 = vmatprep.subr.mxu0 0.0
    %273 = vmatpush1.msra.mxu0 0.0
    %274 = vmatprep.subr.mxu0 0.0
    %275 = vmatpush1.msra.mxu0 0.0
    %276 = vmatprep.subr.mxu0 0.0
    %277 = vmatpush1.msra.mxu0 0.0
    %278 = vmatprep.subr.mxu0 0.0
    %279 = vmatpush1.msra.mxu0 0.0
    %280 = vmatprep.mubr.f32.mxu0 0.0
    %281 = vmatmul.mubr.f32.gmra.mrb[0].mxu0 %v183
    %v282 = vpop.f32.mrb[0].mxu0
    %v283 = vadd.f32 0.0, %v282
    %v284 = vpop.f32.mrb[0].mxu0
    %v285 = vadd.f32 0.0, %v284
    %286 = vdwg.mxu0
    %v287 = vld [vmem:[%s1] sm:$0x3]
    %v289 = vlaneseq
    %v290 = vshrl.u32 %v289, 7
    %v291 = vsub.s32 0, %v290
    %v292 = vrot.slane %v287, %v291
    %v293 = vlaneseq
    %v294 = vshrl.u32 %v293, 7
    %v295 = vsub.s32 1, %v294
    %v296 = vrot.slane %v287, %v295
    %v299 = vsub.f32 %v283, %v292
    %v300 = vsub.f32 %v285, %v296
    %v301 = vmul.f32 %v299, 1.75
    %v302 = vmul.f32 %v300, 1.75
    %v303 = vmul.f32 %v301, %v301
    %v304 = vmul.f32 %v302, %v302
    %v305 = vsub.f32 0.0, %v303
    %v306 = vsub.f32 0.0, %v304
    %v307 = vmul.f32 %v305, 1.442695
    %v308 = vpow.pop %v307
    %v309 = vmul.f32 %v306, 1.442695
    %v310 = vpow.pop %v309
    %v311 = vld [vmem:[#allocation2] sm:$0xff]
    %v312 = vld [vmem:[#allocation8] sm:$0xff]
    %v313 = vld [vmem:[#allocation8 + $0x8] sm:$0xff]
    %v314 = vld [vmem:[#allocation8 + $0x10] sm:$0xff]
    %v315 = vld [vmem:[#allocation8 + $0x18] sm:$0xff]
    %v316 = vld [vmem:[#allocation8 + $0x20] sm:$0xff]
    %v317 = vld [vmem:[#allocation8 + $0x28] sm:$0xff]
    %v318 = vld [vmem:[#allocation8 + $0x30] sm:$0xff]
    %v319 = vld [vmem:[#allocation8 + $0x38] sm:$0xff]
    %v320 = vld [vmem:[#allocation8 + $0x40] sm:$0xff]
    %v321 = vld [vmem:[#allocation8 + $0x48] sm:$0xff]
    %v322 = vld [vmem:[#allocation8 + $0x50] sm:$0xff]
    %v323 = vld [vmem:[#allocation8 + $0x58] sm:$0xff]
    %v324 = vld [vmem:[#allocation8 + $0x60] sm:$0xff]
    %v325 = vld [vmem:[#allocation8 + $0x68] sm:$0xff]
    %v326 = vld [vmem:[#allocation8 + $0x70] sm:$0xff]
    %v327 = vld [vmem:[#allocation8 + $0x78] sm:$0xff]
    %v328 = vld [vmem:[#allocation8 + $0x80] sm:$0xff]
    %v329 = vld [vmem:[#allocation8 + $0x88] sm:$0xff]
    %v330 = vld [vmem:[#allocation8 + $0x90] sm:$0xff]
    %v331 = vld [vmem:[#allocation8 + $0x98] sm:$0xff]
    %v332 = vld [vmem:[#allocation8 + $0xa0] sm:$0xff]
    %v333 = vld [vmem:[#allocation8 + $0xa8] sm:$0xff]
    %v334 = vld [vmem:[#allocation8 + $0xb0] sm:$0xff]
    %v335 = vld [vmem:[#allocation8 + $0xb8] sm:$0xff]
    %v336 = vld [vmem:[#allocation8 + $0xc0] sm:$0xff]
    %v337 = vld [vmem:[#allocation8 + $0xc8] sm:$0xff]
    %v338 = vld [vmem:[#allocation8 + $0xd0] sm:$0xff]
    %v339 = vld [vmem:[#allocation8 + $0xd8] sm:$0xff]
    %v340 = vld [vmem:[#allocation8 + $0xe0] sm:$0xff]
    %v341 = vld [vmem:[#allocation8 + $0xe8] sm:$0xff]
    %v342 = vld [vmem:[#allocation8 + $0xf0] sm:$0xff]
    %v343 = vld [vmem:[#allocation8 + $0xf8] sm:$0xff]
    %344 = vmatprep.subr.mxu0 0.0
    %345 = vmatpush1.msra.mxu0 %v312
    %346 = vmatprep.subr.mxu0 0.0
    %347 = vmatpush1.msra.mxu0 %v313
    %348 = vmatprep.subr.mxu0 0.0
    %349 = vmatpush1.msra.mxu0 %v314
    %350 = vmatprep.subr.mxu0 0.0
    %351 = vmatpush1.msra.mxu0 %v315
    %352 = vmatprep.subr.mxu0 0.0
    %353 = vmatpush1.msra.mxu0 %v316
    %354 = vmatprep.subr.mxu0 0.0
    %355 = vmatpush1.msra.mxu0 %v317
    %356 = vmatprep.subr.mxu0 0.0
    %357 = vmatpush1.msra.mxu0 %v318
    %358 = vmatprep.subr.mxu0 0.0
    %359 = vmatpush1.msra.mxu0 %v319
    %360 = vmatprep.subr.mxu0 0.0
    %361 = vmatpush1.msra.mxu0 %v320
    %362 = vmatprep.subr.mxu0 0.0
    %363 = vmatpush1.msra.mxu0 %v321
    %364 = vmatprep.subr.mxu0 0.0
    %365 = vmatpush1.msra.mxu0 %v322
    %366 = vmatprep.subr.mxu0 0.0
    %367 = vmatpush1.msra.mxu0 %v323
    %368 = vmatprep.subr.mxu0 0.0
    %369 = vmatpush1.msra.mxu0 %v324
    %370 = vmatprep.subr.mxu0 0.0
    %371 = vmatpush1.msra.mxu0 %v325
    %372 = vmatprep.subr.mxu0 0.0
    %373 = vmatpush1.msra.mxu0 %v326
    %374 = vmatprep.subr.mxu0 0.0
    %375 = vmatpush1.msra.mxu0 %v327
    %376 = vmatprep.subr.mxu0 0.0
    %377 = vmatpush1.msra.mxu0 %v328
    %378 = vmatprep.subr.mxu0 0.0
    %379 = vmatpush1.msra.mxu0 %v329
    %380 = vmatprep.subr.mxu0 0.0
    %381 = vmatpush1.msra.mxu0 %v330
    %382 = vmatprep.subr.mxu0 0.0
    %383 = vmatpush1.msra.mxu0 %v331
    %384 = vmatprep.subr.mxu0 0.0
    %385 = vmatpush1.msra.mxu0 %v332
    %386 = vmatprep.subr.mxu0 0.0
    %387 = vmatpush1.msra.mxu0 %v333
    %388 = vmatprep.subr.mxu0 0.0
    %389 = vmatpush1.msra.mxu0 %v334
    %390 = vmatprep.subr.mxu0 0.0
    %391 = vmatpush1.msra.mxu0 %v335
    %392 = vmatprep.subr.mxu0 0.0
    %393 = vmatpush1.msra.mxu0 %v336
    %394 = vmatprep.subr.mxu0 0.0
    %395 = vmatpush1.msra.mxu0 %v337
    %396 = vmatprep.subr.mxu0 0.0
    %397 = vmatpush1.msra.mxu0 %v338
    %398 = vmatprep.subr.mxu0 0.0
    %399 = vmatpush1.msra.mxu0 %v339
    %400 = vmatprep.subr.mxu0 0.0
    %401 = vmatpush1.msra.mxu0 %v340
    %402 = vmatprep.subr.mxu0 0.0
    %403 = vmatpush1.msra.mxu0 %v341
    %404 = vmatprep.subr.mxu0 0.0
    %405 = vmatpush1.msra.mxu0 %v342
    %406 = vmatprep.subr.mxu0 0.0
    %407 = vmatpush1.msra.mxu0 %v343
    %408 = vmatprep.mubr.f32.mxu0 %v310
    %409 = vmatmul.mubr.f32.gmra.mrb[0].mxu0 %v308
    %v410 = vpop.f32.mrb[0].mxu0
    %v411 = vadd.f32 0.0, %v410
    %v412 = vpop.f32.mrb[0].mxu0
    %413 = vdwg.mxu0
    %v414 = vadd.f32 %v311, %v411
    %415 = vst [vmem:[#allocation2] sm:$0xff] %v414
    // Predicated region
    $region46: #{tpu_custom_call.1} parent=1 // pred_check
      %p416 = pneg %p77
    $region47: #{tpu_custom_call.1} parent=1 // pred_check_branch
      %418 = sbr.rel (%p416) target = $region49
    $region48: #{tpu_custom_call.1} parent=1 // pred_region
      %v419 = vld [vmem:[#allocation2] sm:$0xff]
      %420 = vst [vmem:[#allocation11] sm:$0xff] %v419
    $region49: #{tpu_custom_call.1} parent=1 // pred_fallthru
      _
    // Predicated region
    $region50: #{tpu_custom_call.1} parent=1 // pred_check
      _
    $region51: #{tpu_custom_call.1} parent=1 // pred_check_branch
      %422 = sbr.rel (0) target = $region53
    $region52: #{tpu_custom_call.1} parent=1 // pred_region
      %s424 = ssub.s32 128, 128
      %425 = vsyncadd [#allocation5], %s424
      %s427 = sshll.u32 [#allocation11], 4
      %s428 = int_to_ptr.vmem [resolvable:$true] %s427
      %430 = dma.vmem_to_hbm [thread:$0]  %s428, 128, %s6, [#allocation5]
    $region53: #{tpu_custom_call.1} parent=1 // pred_fallthru
      _
    // Predicated region
    $region54: #{tpu_custom_call.1} parent=1 // pred_check
      _
    $region55: #{tpu_custom_call.1} parent=1 // pred_check_branch
      %432 = sbr.rel (0) target = $region57
    $region56: #{tpu_custom_call.1} parent=1 // pred_region
      %433 = dma.done [#allocation5], 128
    $region57: #{tpu_custom_call.1} parent=1 // pred_fallthru
      _
    %434 = vsyncpa [#allocation4], 1
    %435 = vsyncpa [#allocation7], 1
    %436 = vsyncpa [#allocation10], 1
    %437 = vsyncpa [#allocation5], 1

</llo_original>
